<compile_context>
chip_gen: v7x
topology: tpu7x:2x2x1
jax: 0.10.0
libtpu: 0.0.40
codegen_flags: <defaults>
</compile_context>

<pallas_src>
import jax
import jax.numpy as jnp
from jax.experimental import pallas as pl
from jax.experimental.pallas import tpu as pltpu

_LANE = 128      # lane width: matmul N dims padded to this
_SUBLANE = 8     # f32 sublane: batch tile is a multiple of this
_MIB = 1024 * 1024


def _round_up(n, m):
    return ((n + m - 1) // m) * m


def _vmem_capacity_bytes():
    """Physical VMEM of this chip; conservative fallback if the query fails."""
    try:
        info = pltpu.get_tpu_info()
        cap = int(getattr(info, "vmem_capacity_bytes", 0))
        if cap > 0:
            return cap
    except Exception:
        pass
    return 64 * _MIB   # v7x per-core VMEM (smallest current part)


# ----------------------------------------------------------------------------
# Kernel
#   grid = (batch tiles, fc1-K tiles); fc1 is accumulated over K in an f32
#   VMEM scratch, fc2/fc3 + bias/ReLU epilogue run on the last K step.
# ----------------------------------------------------------------------------
def _sad_kernel(x_ref, w1_ref, b1_ref, w2_ref, b2_ref, w3_ref, b3_ref,
                o_ref, acc_ref):
    k = pl.program_id(1)

    @pl.when(k == 0)
    def _():
        acc_ref[...] = jnp.zeros_like(acc_ref)

    # fc1 partial sum: x streams from HBM as f32 (no wrapper prepass); cast to
    # bf16 right at the MXU feed, accumulate in f32.
    acc_ref[...] += jnp.dot(x_ref[...].astype(w1_ref.dtype), w1_ref[...],
                            preferred_element_type=jnp.float32)

    @pl.when(k == pl.num_programs(1) - 1)
    def _():
        # Epilogue: bias + ReLU in f32 (VPU, v5e-safe), then fc2 / fc3 on MXU.
        h = jnp.maximum(acc_ref[...] + b1_ref[...], 0.0)
        h = jnp.dot(h.astype(w2_ref.dtype), w2_ref[...],
                    preferred_element_type=jnp.float32)
        h = jnp.maximum(h + b2_ref[...], 0.0)
        o = jnp.dot(h.astype(w3_ref.dtype), w3_ref[...],
                    preferred_element_type=jnp.float32)
        o_ref[...] = (o + b3_ref[...]).astype(o_ref.dtype)


# ----------------------------------------------------------------------------
# Tiling plan (chip-aware)
# ----------------------------------------------------------------------------
def plan_tiling(batch, d_in, h0, h1, seq, *, block_b=512, force_tk=None,
                vmem_budget_bytes=None):
    h0_p, h1_p, seq_p = (_round_up(n, _LANE) for n in (h0, h1, seq))

    vmem_phys = _vmem_capacity_bytes()
    if vmem_budget_bytes is None:
        vmem_budget_bytes = int(vmem_phys * 0.7)   # headroom for Mosaic scratch

    # --- fc1 K tile ---------------------------------------------------------
    # fc2/fc3 weights + all biases stay resident (single-buffered).
    fixed_w = h0_p * h1_p * 2 + h1_p * seq_p * 2 + (h0_p + h1_p + seq_p) * 4
    w1_budget = max(vmem_budget_bytes // 3, 2 * _MIB)
    if force_tk is not None:
        tk = int(force_tk)
    elif d_in * h0_p * 2 <= w1_budget:
        tk = d_in                                  # whole K resident, 1 K step
    else:
        tk = (w1_budget // (2 * h0_p * 2)) // _LANE * _LANE   # double-buffered
        tk = max(tk, _LANE)
    if tk >= d_in:
        tk, d_in_p = d_in, d_in                    # no feature pad, no x prepass
    else:
        tk = max(_round_up(tk, _LANE) if tk % _LANE else tk, _LANE)
        d_in_p = _round_up(d_in, tk)
    n_k = d_in_p // tk
    w1_resident = (1 if n_k == 1 else 2) * tk * h0_p * 2

    # --- batch tile ---------------------------------------------------------
    # Per-row VMEM: double-buffered f32 x slab + f32 out slab, f32 accumulator,
    # plus in-kernel temporaries (bf16 casts, fc2 activations).
    per_row = (2 * tk * 4) + (2 * seq_p * 4) + (h0_p * 4) \
              + (tk * 2 + h0_p * 6 + h1_p * 6 + seq_p * 4)
    avail = vmem_budget_bytes - fixed_w - w1_resident
    tm = max(avail // max(per_row, 1), _SUBLANE)
    tm = min(int(tm) // _SUBLANE * _SUBLANE, block_b, _round_up(batch, _SUBLANE))
    tm = max(tm, _SUBLANE)
    b_p = _round_up(batch, tm)
    n_b = b_p // tm

    need = fixed_w + w1_resident + tm * per_row + 4 * _MIB
    vmem_limit = int(min(max(need, 32 * _MIB), vmem_phys * 9 // 10))

    return dict(tk=tk, d_in=d_in, d_in_p=d_in_p, n_k=n_k,
                h0_p=h0_p, h1_p=h1_p, seq_p=seq_p,
                tm=tm, b_p=b_p, n_b=n_b, vmem_limit=vmem_limit)


# ----------------------------------------------------------------------------
# Params
# ----------------------------------------------------------------------------
def init_params(key, input_size, seq_length, hidden_size):
    """Raw f32 params; weights stored as (in_features, out_features)."""
    d_in = input_size * seq_length
    k1, k2, k3, k4, k5, k6 = jax.random.split(key, 6)
    w1 = jax.random.normal(k1, (d_in, hidden_size[0]), jnp.float32) * 0.02
    b1 = jax.random.normal(k2, (1, hidden_size[0]), jnp.float32) * 0.01
    w2 = jax.random.normal(k3, (hidden_size[0], hidden_size[1]), jnp.float32) * 0.02
    b2 = jax.random.normal(k4, (1, hidden_size[1]), jnp.float32) * 0.01
    w3 = jax.random.normal(k5, (hidden_size[1], seq_length), jnp.float32) * 0.02
    b3 = jax.random.normal(k6, (1, seq_length), jnp.float32) * 0.01
    return (w1, b1, w2, b2, w3, b3)


def pad_params(params, plan, compute_dtype=jnp.bfloat16):
    """One-time pad of weight N dims (and fc1 K, if K-tiled) to the plan;
    weights in the MXU compute dtype, biases kept f32 for the f32 epilogue."""
    w1, b1, w2, b2, w3, b3 = params
    d_in_p, h0_p, h1_p, seq_p = (plan["d_in_p"], plan["h0_p"],
                                 plan["h1_p"], plan["seq_p"])

    def pad2(a, rows, cols, dtype):
        return jnp.pad(a, ((0, rows - a.shape[0]),
                           (0, cols - a.shape[1]))).astype(dtype)

    return (pad2(w1, d_in_p, h0_p, compute_dtype),
            pad2(b1, 1, h0_p, jnp.float32),
            pad2(w2, h0_p, h1_p, compute_dtype),
            pad2(b2, 1, h1_p, jnp.float32),
            pad2(w3, h1_p, seq_p, compute_dtype),
            pad2(b3, 1, seq_p, jnp.float32))


# ----------------------------------------------------------------------------
# Forward wrapper
# ----------------------------------------------------------------------------
def _sad_forward_impl(x, padded_params, plan, seq_length, *, use_buffered):
    w1_p, b1_p, w2_p, b2_p, w3_p, b3_p = padded_params
    B = x.shape[0]
    x_flat = x.reshape(B, -1)                       # torch x.view(B, -1); stays f32

    tk, d_in, d_in_p = plan["tk"], plan["d_in"], plan["d_in_p"]
    h0_p, h1_p, seq_p = plan["h0_p"], plan["h1_p"], plan["seq_p"]
    tm, b_p, n_b, n_k = plan["tm"], plan["b_p"], plan["n_b"], plan["n_k"]

    # Only the (<= tm-1) batch-pad rows -- and the K pad, only when fc1 is
    # K-tiled -- are materialized; no full pad/cast prepass over x otherwise.
    if b_p != B or d_in_p != d_in:
        x_flat = jnp.pad(x_flat, ((0, b_p - B), (0, d_in_p - d_in)))

    def resident_spec(shape):
        # Constant-block inputs: single-buffer to halve resident VMEM.
        if use_buffered:
            return pl.BlockSpec(shape, lambda i, k: (0, 0),
                                pipeline_mode=pl.Buffered(1))
        return pl.BlockSpec(shape, lambda i, k: (0, 0))

    if n_k == 1 and use_buffered:
        w1_spec = pl.BlockSpec((tk, h0_p), lambda i, k: (k, 0),
                               pipeline_mode=pl.Buffered(1))
    else:
        w1_spec = pl.BlockSpec((tk, h0_p), lambda i, k: (k, 0))

    flops = 2 * b_p * (d_in_p * h0_p + h0_p * h1_p + h1_p * seq_p)
    bytes_accessed = (x_flat.size * x_flat.dtype.itemsize + b_p * seq_p * 4
                      + sum(int(a.size) * a.dtype.itemsize for a in padded_params))

    # TODO(synk): on v7x, use pltpu.CORE_PARALLEL (or an explicit core_map over
    # create_tensorcore_mesh) for the batch axis to shard across both TCs.
    out = pl.pallas_call(
        _sad_kernel,
        out_shape=jax.ShapeDtypeStruct((b_p, seq_p), jnp.float32),
        grid_spec=pltpu.PrefetchScalarGridSpec(
            num_scalar_prefetch=0,
            grid=(n_b, n_k),
            in_specs=[
                pl.BlockSpec((tm, tk), lambda i, k: (i, k)),   # x: streamed f32
                w1_spec,                                       # fc1 weight K tile
                resident_spec((1, h0_p)),
                resident_spec((h0_p, h1_p)),
                resident_spec((1, h1_p)),
                resident_spec((h1_p, seq_p)),
                resident_spec((1, seq_p)),
            ],
            out_specs=pl.BlockSpec((tm, seq_p), lambda i, k: (i, 0)),
            scratch_shapes=[pltpu.VMEM((tm, h0_p), jnp.float32)],
        ),
        compiler_params=pltpu.CompilerParams(
            dimension_semantics=("parallel", "arbitrary"),
            vmem_limit_bytes=int(plan["vmem_limit"]),
        ),
        cost_estimate=pl.CostEstimate(
            flops=int(flops), transcendentals=0,
            bytes_accessed=int(bytes_accessed)),
    )(x_flat, w1_p, b1_p, w2_p, b2_p, w3_p, b3_p)

    # Strip batch/lane padding; the trailing unsqueeze(-1) stays in the wrapper
    # (a last dim of 1 inside the kernel would be the worst store layout).
    return out[:B, :seq_length, None]


def sad_forward(x, padded_params, plan, seq_length):
    """x: (B, SEQ, FEAT) f32 -> (B, SEQ, 1) f32 (same math as SADModel.forward)."""
    try:
        return _sad_forward_impl(x, padded_params, plan, seq_length,
                                 use_buffered=True)
    except Exception:
        # Fallback if this JAX build rejects pipeline_mode=pl.Buffered(1).
        return _sad_forward_impl(x, padded_params, plan, seq_length,
                                 use_buffered=False)


# ----------------------------------------------------------------------------
# References
# ----------------------------------------------------------------------------
def _ref_bf16(x, params):
    """Same bf16-operand / f32-accumulate math as the kernel."""
    w1, b1, w2, b2, w3, b3 = params
    xf = x.reshape(x.shape[0], -1)
    bd = jnp.bfloat16
    h = jnp.dot(xf.astype(bd), w1.astype(bd), preferred_element_type=jnp.float32)
    h = jnp.maximum(h + b1, 0.0)
    h = jnp.dot(h.astype(bd), w2.astype(bd), preferred_element_type=jnp.float32)
    h = jnp.maximum(h + b2, 0.0)
    return (jnp.dot(h.astype(bd), w3.astype(bd),
                    preferred_element_type=jnp.float32) + b3)[:, :, None]


def _ref_f32(x, params):
    """Full-f32 PyTorch-equivalent forward."""
    w1, b1, w2, b2, w3, b3 = params
    xf = x.reshape(x.shape[0], -1)
    h = jnp.maximum(xf @ w1 + b1, 0.0)
    h = jnp.maximum(h @ w2 + b2, 0.0)
    return (h @ w3 + b3)[:, :, None]


# ----------------------------------------------------------------------------
# Self-test
# ----------------------------------------------------------------------------
if __name__ == "__main__":
    key = jax.random.PRNGKey(0)
    kx1, kp1, kx2, kp2 = jax.random.split(key, 4)

    # Config 1: small shapes consistent with SADModel.forward:
    #   batch=2, input_size=4, seq_length=8, hidden=[32, 64]
    B, FEAT, SEQ = 2, 4, 8
    HIDDEN = [32, 64]
    x = jax.random.normal(kx1, (B, SEQ, FEAT), jnp.float32)
    params = init_params(kp1, FEAT, SEQ, HIDDEN)
    plan = plan_tiling(B, FEAT * SEQ, HIDDEN[0], HIDDEN[1], SEQ)
    out = jax.block_until_ready(sad_forward(x, pad_params(params, plan), plan, SEQ))
    assert out.shape == (B, SEQ, 1), out.shape
    assert jnp.allclose(out, _ref_bf16(x, params), atol=2e-3, rtol=1e-2), \
        "config1: mismatch vs bf16 reference"
    assert jnp.allclose(out, _ref_f32(x, params), atol=2e-2, rtol=2e-2), \
        "config1: mismatch vs f32 reference"

    # Config 2: force the fc1 K-reduction grid axis (n_k > 1), the path used
    # for the real torch config (d_in = 30*500 = 15000) on 64 MiB-VMEM parts.
    FEAT2, SEQ2 = 30, 16                     # d_in = 480 -> padded to 512, n_k = 4
    x2 = jax.random.normal(kx2, (B, SEQ2, FEAT2), jnp.float32)
    params2 = init_params(kp2, FEAT2, SEQ2, HIDDEN)
    plan2 = plan_tiling(B, FEAT2 * SEQ2, HIDDEN[0], HIDDEN[1], SEQ2, force_tk=128)
    assert plan2["n_k"] == 4, plan2
    out2 = jax.block_until_ready(
        sad_forward(x2, pad_params(params2, plan2), plan2, SEQ2))
    assert out2.shape == (B, SEQ2, 1), out2.shape
    assert jnp.allclose(out2, _ref_bf16(x2, params2), atol=2e-3, rtol=1e-2), \
        "config2: mismatch vs bf16 reference"
    assert jnp.allclose(out2, _ref_f32(x2, params2), atol=2e-2, rtol=2e-2), \
        "config2: mismatch vs f32 reference"

    print("KERNEL_OK")
</pallas_src>

<mosaic_0001>
module attributes {stable_mosaic.version = 11 : i64} {
  func.func @_sad_kernel(%arg0: i32, %arg1: i32, %arg2: memref<8x32xf32, #tpu.memory_space<vmem>>, %arg3: memref<32x128xbf16, #tpu.memory_space<vmem>>, %arg4: memref<1x128xf32, #tpu.memory_space<vmem>>, %arg5: memref<128x128xbf16, #tpu.memory_space<vmem>>, %arg6: memref<1x128xf32, #tpu.memory_space<vmem>>, %arg7: memref<128x128xbf16, #tpu.memory_space<vmem>>, %arg8: memref<1x128xf32, #tpu.memory_space<vmem>>, %arg9: memref<8x128xf32, #tpu.memory_space<vmem>>, %arg10: memref<8x128xf32, #tpu.memory_space<vmem>>) attributes {dimension_semantics = [#tpu.dimension_semantics<parallel>, #tpu.dimension_semantics<arbitrary>], iteration_bounds = array<i64: 1, 1>, scalar_prefetch = 0 : i64, scratch_operands = 1 : i64, tpu.core_type = #tpu.core_type<tc>, window_params = [{transform_indices = @transform_0, window_bounds = array<i64: 8, 32>}, {pipeline_mode = #tpu.pipeline_mode<synchronous>, transform_indices = @transform_1, window_bounds = array<i64: 32, 128>}, {pipeline_mode = #tpu.pipeline_mode<synchronous>, transform_indices = @transform_2, window_bounds = array<i64: 1, 128>}, {pipeline_mode = #tpu.pipeline_mode<synchronous>, transform_indices = @transform_3, window_bounds = array<i64: 128, 128>}, {pipeline_mode = #tpu.pipeline_mode<synchronous>, transform_indices = @transform_4, window_bounds = array<i64: 1, 128>}, {pipeline_mode = #tpu.pipeline_mode<synchronous>, transform_indices = @transform_5, window_bounds = array<i64: 128, 128>}, {pipeline_mode = #tpu.pipeline_mode<synchronous>, transform_indices = @transform_6, window_bounds = array<i64: 1, 128>}, {transform_indices = @transform_7, window_bounds = array<i64: 8, 128>}]} {
    %c0_i32 = arith.constant 0 : i32
    %0 = arith.cmpi eq, %arg1, %c0_i32 : i32
    %1 = arith.extui %0 : i1 to i32
    %c0_i32_0 = arith.constant 0 : i32
    %2 = arith.cmpi ne, %1, %c0_i32_0 : i32
    scf.if %2 {
      %cst_10 = arith.constant 0.000000e+00 : f32
      %13 = vector.broadcast %cst_10 : f32 to vector<8x128xf32>
      %c0_11 = arith.constant 0 : index
      %c0_12 = arith.constant 0 : index
      %14 = vector.load %arg10[%c0_11, %c0_12] : memref<8x128xf32, #tpu.memory_space<vmem>>, vector<8x128xf32>
      tpu.vector_store %arg10[%c0_11, %c0_12], %13 {strides = array<i32>} : memref<8x128xf32, #tpu.memory_space<vmem>>, vector<8x128xf32>,
    } else {
    }
    %c0 = arith.constant 0 : index
    %c0_1 = arith.constant 0 : index
    %3 = vector.load %arg10[%c0, %c0_1] : memref<8x128xf32, #tpu.memory_space<vmem>>, vector<8x128xf32>
    %c0_2 = arith.constant 0 : index
    %c0_3 = arith.constant 0 : index
    %4 = vector.load %arg2[%c0_2, %c0_3] : memref<8x32xf32, #tpu.memory_space<vmem>>, vector<8x32xf32>
    %5 = arith.truncf %4 : vector<8x32xf32> to vector<8x32xbf16>
    %c0_4 = arith.constant 0 : index
    %c0_5 = arith.constant 0 : index
    %6 = vector.load %arg3[%c0_4, %c0_5] : memref<32x128xbf16, #tpu.memory_space<vmem>>, vector<32x128xbf16>
    %cst = arith.constant dense<0.000000e+00> : vector<8x128xf32>
    %7 = tpu.matmul %5, %6, %cst {dimension_numbers = #tpu.dot_dimension_numbers<[1], [0], [0], [1], [0, 0, 1, 1], [], []>} : vector<8x32xbf16>, vector<32x128xbf16>, vector<8x128xf32> -> vector<8x128xf32>
    %8 = arith.addf %3, %7 : vector<8x128xf32>
    %c0_6 = arith.constant 0 : index
    %c0_7 = arith.constant 0 : index
    %9 = vector.load %arg10[%c0_6, %c0_7] : memref<8x128xf32, #tpu.memory_space<vmem>>, vector<8x128xf32>
    tpu.vector_store %arg10[%c0_6, %c0_7], %8 {strides = array<i32>} : memref<8x128xf32, #tpu.memory_space<vmem>>, vector<8x128xf32>,
    %c0_i32_8 = arith.constant 0 : i32
    %10 = arith.cmpi eq, %arg1, %c0_i32_8 : i32
    %11 = arith.extui %10 : i1 to i32
    %c0_i32_9 = arith.constant 0 : i32
    %12 = arith.cmpi ne, %11, %c0_i32_9 : i32
    scf.if %12 {
      %c0_10 = arith.constant 0 : index
      %c0_11 = arith.constant 0 : index
      %13 = vector.load %arg10[%c0_10, %c0_11] : memref<8x128xf32, #tpu.memory_space<vmem>>, vector<8x128xf32>
      %c0_12 = arith.constant 0 : index
      %c0_13 = arith.constant 0 : index
      %14 = vector.load %arg4[%c0_12, %c0_13] : memref<1x128xf32, #tpu.memory_space<vmem>>, vector<1x128xf32>
      %15 = vector.broadcast %14 : vector<1x128xf32> to vector<8x128xf32>
      %16 = arith.addf %13, %15 : vector<8x128xf32>
      %cst_14 = arith.constant 0.000000e+00 : f32
      %17 = vector.broadcast %cst_14 : f32 to vector<8x128xf32>
      %18 = arith.maximumf %16, %17 : vector<8x128xf32>
      %19 = arith.truncf %18 : vector<8x128xf32> to vector<8x128xbf16>
      %c0_15 = arith.constant 0 : index
      %c0_16 = arith.constant 0 : index
      %20 = vector.load %arg5[%c0_15, %c0_16] : memref<128x128xbf16, #tpu.memory_space<vmem>>, vector<128x128xbf16>
      %cst_17 = arith.constant dense<0.000000e+00> : vector<8x128xf32>
      %21 = tpu.matmul %19, %20, %cst_17 {dimension_numbers = #tpu.dot_dimension_numbers<[1], [0], [0], [1], [0, 0, 1, 1], [], []>} : vector<8x128xbf16>, vector<128x128xbf16>, vector<8x128xf32> -> vector<8x128xf32>
      %c0_18 = arith.constant 0 : index
      %c0_19 = arith.constant 0 : index
      %22 = vector.load %arg6[%c0_18, %c0_19] : memref<1x128xf32, #tpu.memory_space<vmem>>, vector<1x128xf32>
      %23 = vector.broadcast %22 : vector<1x128xf32> to vector<8x128xf32>
      %24 = arith.addf %21, %23 : vector<8x128xf32>
      %cst_20 = arith.constant 0.000000e+00 : f32
      %25 = vector.broadcast %cst_20 : f32 to vector<8x128xf32>
      %26 = arith.maximumf %24, %25 : vector<8x128xf32>
      %27 = arith.truncf %26 : vector<8x128xf32> to vector<8x128xbf16>
      %c0_21 = arith.constant 0 : index
      %c0_22 = arith.constant 0 : index
      %28 = vector.load %arg7[%c0_21, %c0_22] : memref<128x128xbf16, #tpu.memory_space<vmem>>, vector<128x128xbf16>
      %cst_23 = arith.constant dense<0.000000e+00> : vector<8x128xf32>
      %29 = tpu.matmul %27, %28, %cst_23 {dimension_numbers = #tpu.dot_dimension_numbers<[1], [0], [0], [1], [0, 0, 1, 1], [], []>} : vector<8x128xbf16>, vector<128x128xbf16>, vector<8x128xf32> -> vector<8x128xf32>
      %c0_24 = arith.constant 0 : index
      %c0_25 = arith.constant 0 : index
      %30 = vector.load %arg8[%c0_24, %c0_25] : memref<1x128xf32, #tpu.memory_space<vmem>>, vector<1x128xf32>
      %31 = vector.broadcast %30 : vector<1x128xf32> to vector<8x128xf32>
      %32 = arith.addf %29, %31 : vector<8x128xf32>
      %c0_26 = arith.constant 0 : index
      %c0_27 = arith.constant 0 : index
      %33 = vector.load %arg9[%c0_26, %c0_27] : memref<8x128xf32, #tpu.memory_space<vmem>>, vector<8x128xf32>
      tpu.vector_store %arg9[%c0_26, %c0_27], %32 {strides = array<i32>} : memref<8x128xf32, #tpu.memory_space<vmem>>, vector<8x128xf32>,
    } else {
    }
    return
  }
  func.func @transform_0(%arg0: i32, %arg1: i32) -> (i32, i32) {
    %c0_i32 = arith.constant 0 : i32
    return %arg0, %arg1 : i32, i32
  }
  func.func @transform_1(%arg0: i32, %arg1: i32) -> (i32, i32) {
    %c0_i32 = arith.constant 0 : i32
    %c0_i32_0 = arith.constant 0 : i32
    return %arg1, %c0_i32 : i32, i32
  }
  func.func @transform_2(%arg0: i32, %arg1: i32) -> (i32, i32) {
    %c0_i32 = arith.constant 0 : i32
    %c0_i32_0 = arith.constant 0 : i32
    %c0_i32_1 = arith.constant 0 : i32
    return %c0_i32, %c0_i32_0 : i32, i32
  }
  func.func @transform_3(%arg0: i32, %arg1: i32) -> (i32, i32) {
    %c0_i32 = arith.constant 0 : i32
    %c0_i32_0 = arith.constant 0 : i32
    %c0_i32_1 = arith.constant 0 : i32
    return %c0_i32, %c0_i32_0 : i32, i32
  }
  func.func @transform_4(%arg0: i32, %arg1: i32) -> (i32, i32) {
    %c0_i32 = arith.constant 0 : i32
    %c0_i32_0 = arith.constant 0 : i32
    %c0_i32_1 = arith.constant 0 : i32
    return %c0_i32, %c0_i32_0 : i32, i32
  }
  func.func @transform_5(%arg0: i32, %arg1: i32) -> (i32, i32) {
    %c0_i32 = arith.constant 0 : i32
    %c0_i32_0 = arith.constant 0 : i32
    %c0_i32_1 = arith.constant 0 : i32
    return %c0_i32, %c0_i32_0 : i32, i32
  }
  func.func @transform_6(%arg0: i32, %arg1: i32) -> (i32, i32) {
    %c0_i32 = arith.constant 0 : i32
    %c0_i32_0 = arith.constant 0 : i32
    %c0_i32_1 = arith.constant 0 : i32
    return %c0_i32, %c0_i32_0 : i32, i32
  }
  func.func @transform_7(%arg0: i32, %arg1: i32) -> (i32, i32) {
    %c0_i32 = arith.constant 0 : i32
    %c0_i32_0 = arith.constant 0 : i32
    return %arg0, %c0_i32 : i32, i32
  }
}

module attributes {stable_mosaic.version = 11 : i64} {
  func.func @_sad_kernel(%arg0: i32, %arg1: i32, %arg2: memref<8x32xf32, #tpu.memory_space<vmem>>, %arg3: memref<32x128xbf16, #tpu.memory_space<vmem>>, %arg4: memref<1x128xf32, #tpu.memory_space<vmem>>, %arg5: memref<128x128xbf16, #tpu.memory_space<vmem>>, %arg6: memref<1x128xf32, #tpu.memory_space<vmem>>, %arg7: memref<128x128xbf16, #tpu.memory_space<vmem>>, %arg8: memref<1x128xf32, #tpu.memory_space<vmem>>, %arg9: memref<8x128xf32, #tpu.memory_space<vmem>>, %arg10: memref<8x128xf32, #tpu.memory_space<vmem>>) attributes {dimension_semantics = [#tpu.dimension_semantics<parallel>, #tpu.dimension_semantics<arbitrary>], iteration_bounds = array<i64: 1, 1>, scalar_prefetch = 0 : i64, scratch_operands = 1 : i64, tpu.core_type = #tpu.core_type<tc>, window_params = [{transform_indices = @transform_0, window_bounds = array<i64: 8, 32>}, {transform_indices = @transform_1, window_bounds = array<i64: 32, 128>}, {pipeline_mode = #tpu.pipeline_mode<synchronous>, transform_indices = @transform_2, window_bounds = array<i64: 1, 128>}, {pipeline_mode = #tpu.pipeline_mode<synchronous>, transform_indices = @transform_3, window_bounds = array<i64: 128, 128>}, {pipeline_mode = #tpu.pipeline_mode<synchronous>, transform_indices = @transform_4, window_bounds = array<i64: 1, 128>}, {pipeline_mode = #tpu.pipeline_mode<synchronous>, transform_indices = @transform_5, window_bounds = array<i64: 128, 128>}, {pipeline_mode = #tpu.pipeline_mode<synchronous>, transform_indices = @transform_6, window_bounds = array<i64: 1, 128>}, {transform_indices = @transform_7, window_bounds = array<i64: 8, 128>}]} {
    %c0_i32 = arith.constant 0 : i32
    %0 = arith.cmpi eq, %arg1, %c0_i32 : i32
    %1 = arith.extui %0 : i1 to i32
    %c0_i32_0 = arith.constant 0 : i32
    %2 = arith.cmpi ne, %1, %c0_i32_0 : i32
    scf.if %2 {
      %cst_10 = arith.constant 0.000000e+00 : f32
      %13 = vector.broadcast %cst_10 : f32 to vector<8x128xf32>
      %c0_11 = arith.constant 0 : index
      %c0_12 = arith.constant 0 : index
      %14 = vector.load %arg10[%c0_11, %c0_12] : memref<8x128xf32, #tpu.memory_space<vmem>>, vector<8x128xf32>
      tpu.vector_store %arg10[%c0_11, %c0_12], %13 {strides = array<i32>} : memref<8x128xf32, #tpu.memory_space<vmem>>, vector<8x128xf32>,
    } else {
    }
    %c0 = arith.constant 0 : index
    %c0_1 = arith.constant 0 : index
    %3 = vector.load %arg10[%c0, %c0_1] : memref<8x128xf32, #tpu.memory_space<vmem>>, vector<8x128xf32>
    %c0_2 = arith.constant 0 : index
    %c0_3 = arith.constant 0 : index
    %4 = vector.load %arg2[%c0_2, %c0_3] : memref<8x32xf32, #tpu.memory_space<vmem>>, vector<8x32xf32>
    %5 = arith.truncf %4 : vector<8x32xf32> to vector<8x32xbf16>
    %c0_4 = arith.constant 0 : index
    %c0_5 = arith.constant 0 : index
    %6 = vector.load %arg3[%c0_4, %c0_5] : memref<32x128xbf16, #tpu.memory_space<vmem>>, vector<32x128xbf16>
    %cst = arith.constant dense<0.000000e+00> : vector<8x128xf32>
    %7 = tpu.matmul %5, %6, %cst {dimension_numbers = #tpu.dot_dimension_numbers<[1], [0], [0], [1], [0, 0, 1, 1], [], []>} : vector<8x32xbf16>, vector<32x128xbf16>, vector<8x128xf32> -> vector<8x128xf32>
    %8 = arith.addf %3, %7 : vector<8x128xf32>
    %c0_6 = arith.constant 0 : index
    %c0_7 = arith.constant 0 : index
    %9 = vector.load %arg10[%c0_6, %c0_7] : memref<8x128xf32, #tpu.memory_space<vmem>>, vector<8x128xf32>
    tpu.vector_store %arg10[%c0_6, %c0_7], %8 {strides = array<i32>} : memref<8x128xf32, #tpu.memory_space<vmem>>, vector<8x128xf32>,
    %c0_i32_8 = arith.constant 0 : i32
    %10 = arith.cmpi eq, %arg1, %c0_i32_8 : i32
    %11 = arith.extui %10 : i1 to i32
    %c0_i32_9 = arith.constant 0 : i32
    %12 = arith.cmpi ne, %11, %c0_i32_9 : i32
    scf.if %12 {
      %c0_10 = arith.constant 0 : index
      %c0_11 = arith.constant 0 : index
      %13 = vector.load %arg10[%c0_10, %c0_11] : memref<8x128xf32, #tpu.memory_space<vmem>>, vector<8x128xf32>
      %c0_12 = arith.constant 0 : index
      %c0_13 = arith.constant 0 : index
      %14 = vector.load %arg4[%c0_12, %c0_13] : memref<1x128xf32, #tpu.memory_space<vmem>>, vector<1x128xf32>
      %15 = vector.broadcast %14 : vector<1x128xf32> to vector<8x128xf32>
      %16 = arith.addf %13, %15 : vector<8x128xf32>
      %cst_14 = arith.constant 0.000000e+00 : f32
      %17 = vector.broadcast %cst_14 : f32 to vector<8x128xf32>
      %18 = arith.maximumf %16, %17 : vector<8x128xf32>
      %19 = arith.truncf %18 : vector<8x128xf32> to vector<8x128xbf16>
      %c0_15 = arith.constant 0 : index
      %c0_16 = arith.constant 0 : index
      %20 = vector.load %arg5[%c0_15, %c0_16] : memref<128x128xbf16, #tpu.memory_space<vmem>>, vector<128x128xbf16>
      %cst_17 = arith.constant dense<0.000000e+00> : vector<8x128xf32>
      %21 = tpu.matmul %19, %20, %cst_17 {dimension_numbers = #tpu.dot_dimension_numbers<[1], [0], [0], [1], [0, 0, 1, 1], [], []>} : vector<8x128xbf16>, vector<128x128xbf16>, vector<8x128xf32> -> vector<8x128xf32>
      %c0_18 = arith.constant 0 : index
      %c0_19 = arith.constant 0 : index
      %22 = vector.load %arg6[%c0_18, %c0_19] : memref<1x128xf32, #tpu.memory_space<vmem>>, vector<1x128xf32>
      %23 = vector.broadcast %22 : vector<1x128xf32> to vector<8x128xf32>
      %24 = arith.addf %21, %23 : vector<8x128xf32>
      %cst_20 = arith.constant 0.000000e+00 : f32
      %25 = vector.broadcast %cst_20 : f32 to vector<8x128xf32>
      %26 = arith.maximumf %24, %25 : vector<8x128xf32>
      %27 = arith.truncf %26 : vector<8x128xf32> to vector<8x128xbf16>
      %c0_21 = arith.constant 0 : index
      %c0_22 = arith.constant 0 : index
      %28 = vector.load %arg7[%c0_21, %c0_22] : memref<128x128xbf16, #tpu.memory_space<vmem>>, vector<128x128xbf16>
      %cst_23 = arith.constant dense<0.000000e+00> : vector<8x128xf32>
      %29 = tpu.matmul %27, %28, %cst_23 {dimension_numbers = #tpu.dot_dimension_numbers<[1], [0], [0], [1], [0, 0, 1, 1], [], []>} : vector<8x128xbf16>, vector<128x128xbf16>, vector<8x128xf32> -> vector<8x128xf32>
      %c0_24 = arith.constant 0 : index
      %c0_25 = arith.constant 0 : index
      %30 = vector.load %arg8[%c0_24, %c0_25] : memref<1x128xf32, #tpu.memory_space<vmem>>, vector<1x128xf32>
      %31 = vector.broadcast %30 : vector<1x128xf32> to vector<8x128xf32>
      %32 = arith.addf %29, %31 : vector<8x128xf32>
      %c0_26 = arith.constant 0 : index
      %c0_27 = arith.constant 0 : index
      %33 = vector.load %arg9[%c0_26, %c0_27] : memref<8x128xf32, #tpu.memory_space<vmem>>, vector<8x128xf32>
      tpu.vector_store %arg9[%c0_26, %c0_27], %32 {strides = array<i32>} : memref<8x128xf32, #tpu.memory_space<vmem>>, vector<8x128xf32>,
    } else {
    }
    return
  }
  func.func @transform_0(%arg0: i32, %arg1: i32) -> (i32, i32) {
    %c0_i32 = arith.constant 0 : i32
    return %arg0, %arg1 : i32, i32
  }
  func.func @transform_1(%arg0: i32, %arg1: i32) -> (i32, i32) {
    %c0_i32 = arith.constant 0 : i32
    %c0_i32_0 = arith.constant 0 : i32
    return %arg1, %c0_i32 : i32, i32
  }
  func.func @transform_2(%arg0: i32, %arg1: i32) -> (i32, i32) {
    %c0_i32 = arith.constant 0 : i32
    %c0_i32_0 = arith.constant 0 : i32
    %c0_i32_1 = arith.constant 0 : i32
    return %c0_i32, %c0_i32_0 : i32, i32
  }
  func.func @transform_3(%arg0: i32, %arg1: i32) -> (i32, i32) {
    %c0_i32 = arith.constant 0 : i32
    %c0_i32_0 = arith.constant 0 : i32
    %c0_i32_1 = arith.constant 0 : i32
    return %c0_i32, %c0_i32_0 : i32, i32
  }
  func.func @transform_4(%arg0: i32, %arg1: i32) -> (i32, i32) {
    %c0_i32 = arith.constant 0 : i32
    %c0_i32_0 = arith.constant 0 : i32
    %c0_i32_1 = arith.constant 0 : i32
    return %c0_i32, %c0_i32_0 : i32, i32
  }
  func.func @transform_5(%arg0: i32, %arg1: i32) -> (i32, i32) {
    %c0_i32 = arith.constant 0 : i32
    %c0_i32_0 = arith.constant 0 : i32
    %c0_i32_1 = arith.constant 0 : i32
    return %c0_i32, %c0_i32_0 : i32, i32
  }
  func.func @transform_6(%arg0: i32, %arg1: i32) -> (i32, i32) {
    %c0_i32 = arith.constant 0 : i32
    %c0_i32_0 = arith.constant 0 : i32
    %c0_i32_1 = arith.constant 0 : i32
    return %c0_i32, %c0_i32_0 : i32, i32
  }
  func.func @transform_7(%arg0: i32, %arg1: i32) -> (i32, i32) {
    %c0_i32 = arith.constant 0 : i32
    %c0_i32_0 = arith.constant 0 : i32
    return %arg0, %c0_i32 : i32, i32
  }
}

</mosaic_0001>

<llo_original>
// kernel: tpu_custom_call.1
$region0: #{tpu_custom_call.1}
  #allocation0 [shape = 'u32[]', space=smem, size = 0x4, offset = 0x4, fixed_abs, tag = 'smem constant byte address 0x4 - core index']
  #allocation1 [shape = 'u32[144,128]{1,0:T(1,128)}', space=vmem, size = 0x12000, scoped, tag = 'internal scratch']
  #allocation2 [shape = 'f32[8,128]{1,0:T(8,128)}', space=vmem, size = 0x1000, scoped, tag = 'scratch operand']
  %s0 = inlined_call_operand.hbm [shape: f32[8,32], index: 0, kind: input, shape index: {}]
  %s1 = inlined_call_operand.hbm [shape: bf16[32,128], index: 1, kind: input, shape index: {}]
  %s2 = inlined_call_operand.vmem [shape: f32[1,128], index: 2, kind: input, shape index: {}]
  %s3 = inlined_call_operand.hbm [shape: bf16[128,128], index: 3, kind: input, shape index: {}]
  %s4 = inlined_call_operand.vmem [shape: f32[1,128], index: 4, kind: input, shape index: {}]
  %s5 = inlined_call_operand.hbm [shape: bf16[128,128], index: 5, kind: input, shape index: {}]
  %s6 = inlined_call_operand.vmem [shape: f32[1,128], index: 6, kind: input, shape index: {}]
  %s7 = inlined_call_operand.hbm [shape: f32[8,128], index: 7, kind: output, shape index: {}]
  %s8 = sld [smem:[#allocation0]]
  $region62: #{tpu_custom_call.1} parent=0
    _
  %s10 = ssub.s32 1, %s8
  %s11 = scalar_select 0, %s10, %s8
  $region1: #{tpu_custom_call.1} parent=0
    #allocation3 [shape = 'u8[4096]{0}', space=vmem, size = 0x1000, scoped, tag = 'input window, operand 0, single buffered']
    #allocation4 [shape = 's32[1]{0}', space=sflag, size = 0x4, scoped, tag = 'scoped memory for tpu_custom_call.1']
    #allocation5 [shape = 's32[1]{0}', space=sflag, size = 0x4, scoped, tag = 'scoped memory for tpu_custom_call.1']
    #allocation6 [shape = 'u8[8192]{0}', space=vmem, size = 0x2000, scoped, tag = 'input window, operand 1, single buffered']
    #allocation7 [shape = 's32[1]{0}', space=sflag, size = 0x4, scoped, tag = 'scoped memory for tpu_custom_call.1']
    #allocation8 [shape = 'u8[32768]{0}', space=vmem, size = 0x8000, scoped, tag = 'input window, operand 3, single buffered']
    #allocation9 [shape = 'u8[32768]{0}', space=vmem, size = 0x8000, scoped, tag = 'input window, operand 5, single buffered']
    #allocation10 [shape = 's32[1]{0}', space=sflag, size = 0x4, scoped, tag = 'scoped memory for tpu_custom_call.1']
    #allocation11 [shape = 'u8[4096]{0}', space=vmem, size = 0x1000, scoped, tag = 'output window, operand 0, single buffered']
    %12 = vsyncpa [#allocation4], 0
    %13 = vsyncpa [#allocation7], 0
    %14 = vsyncpa [#allocation10], 0
    %15 = vsyncpa [#allocation5], 0
    // Predicated region
    $region2: #{tpu_custom_call.1} parent=1 // pred_check
      _
    $region3: #{tpu_custom_call.1} parent=1 // pred_check_branch
      %17 = sbr.rel (0) target = $region5
    $region4: #{tpu_custom_call.1} parent=1 // pred_region
      %s19 = ssub.s32 128, 128
      %20 = vsyncadd [#allocation4], %s19
      %s22 = sshll.u32 [#allocation3], 4
      %s23 = int_to_ptr.vmem [resolvable:$true] %s22
      %25 = dma.hbm_to_vmem [thread:$0]  %s0, 128, %s23, [#allocation4]
    $region5: #{tpu_custom_call.1} parent=1 // pred_fallthru
      _
    // Predicated region
    $region6: #{tpu_custom_call.1} parent=1 // pred_check
      _
    $region7: #{tpu_custom_call.1} parent=1 // pred_check_branch
      %27 = sbr.rel (0) target = $region9
    $region8: #{tpu_custom_call.1} parent=1 // pred_region
      %s29 = ssub.s32 256, 256
      %30 = vsyncadd [#allocation7], %s29
      %s31 = sshll.u32 [#allocation6], 4
      %s32 = int_to_ptr.vmem [resolvable:$true] %s31
      %37 = dma.hbm_to_vmem [thread:$0]  %s1, 256, %s32, [#allocation7], 64, 64, 4
    $region9: #{tpu_custom_call.1} parent=1 // pred_fallthru
      _
    // Predicated region
    $region10: #{tpu_custom_call.1} parent=1 // pred_check
      _
    $region11: #{tpu_custom_call.1} parent=1 // pred_check_branch
      %39 = sbr.rel (0) target = $region13
    $region12: #{tpu_custom_call.1} parent=1 // pred_region
      _
    $region13: #{tpu_custom_call.1} parent=1 // pred_fallthru
      _
    // Predicated region
    $region14: #{tpu_custom_call.1} parent=1 // pred_check
      _
    $region15: #{tpu_custom_call.1} parent=1 // pred_check_branch
      %41 = sbr.rel (0) target = $region17
    $region16: #{tpu_custom_call.1} parent=1 // pred_region
      %s43 = ssub.s32 1024, 1024
      %44 = vsyncadd [#allocation7], %s43
      %s45 = sshll.u32 [#allocation8], 4
      %s46 = int_to_ptr.vmem [resolvable:$true] %s45
      %51 = dma.hbm_to_vmem [thread:$0]  %s3, 1024, %s46, [#allocation7], 64, 64, 4
    $region17: #{tpu_custom_call.1} parent=1 // pred_fallthru
      _
    // Predicated region
    $region18: #{tpu_custom_call.1} parent=1 // pred_check
      _
    $region19: #{tpu_custom_call.1} parent=1 // pred_check_branch
      %53 = sbr.rel (0) target = $region21
    $region20: #{tpu_custom_call.1} parent=1 // pred_region
      _
    $region21: #{tpu_custom_call.1} parent=1 // pred_fallthru
      _
    // Predicated region
    $region22: #{tpu_custom_call.1} parent=1 // pred_check
      _
    $region23: #{tpu_custom_call.1} parent=1 // pred_check_branch
      %55 = sbr.rel (0) target = $region25
    $region24: #{tpu_custom_call.1} parent=1 // pred_region
      %s57 = ssub.s32 1024, 1024
      %58 = vsyncadd [#allocation10], %s57
      %s59 = sshll.u32 [#allocation9], 4
      %s60 = int_to_ptr.vmem [resolvable:$true] %s59
      %65 = dma.hbm_to_vmem [thread:$0]  %s5, 1024, %s60, [#allocation10], 64, 64, 4
    $region25: #{tpu_custom_call.1} parent=1 // pred_fallthru
      _
    // Predicated region
    $region26: #{tpu_custom_call.1} parent=1 // pred_check
      _
    $region27: #{tpu_custom_call.1} parent=1 // pred_check_branch
      %67 = sbr.rel (0) target = $region29
    $region28: #{tpu_custom_call.1} parent=1 // pred_region
      _
    $region29: #{tpu_custom_call.1} parent=1 // pred_fallthru
      _
    // Predicated region
    $region30: #{tpu_custom_call.1} parent=1 // pred_check
      _
    $region31: #{tpu_custom_call.1} parent=1 // pred_check_branch
      %69 = sbr.rel (0) target = $region33
    $region32: #{tpu_custom_call.1} parent=1 // pred_region
      %70 = dma.done [#allocation4], 128
    $region33: #{tpu_custom_call.1} parent=1 // pred_fallthru
      _
    // Predicated region
    $region34: #{tpu_custom_call.1} parent=1 // pred_check
      _
    $region35: #{tpu_custom_call.1} parent=1 // pred_check_branch
      %72 = sbr.rel (0) target = $region37
    $region36: #{tpu_custom_call.1} parent=1 // pred_region
      %73 = dma.done [#allocation7], 256
    $region37: #{tpu_custom_call.1} parent=1 // pred_fallthru
      _
    // Predicated region
    $region38: #{tpu_custom_call.1} parent=1 // pred_check
      _
    $region39: #{tpu_custom_call.1} parent=1 // pred_check_branch
      %75 = sbr.rel (0) target = $region41
    $region40: #{tpu_custom_call.1} parent=1 // pred_region
      %76 = dma.done [#allocation7], 1024
    $region41: #{tpu_custom_call.1} parent=1 // pred_fallthru
      _
    // Predicated region
    $region42: #{tpu_custom_call.1} parent=1 // pred_check
      _
    $region43: #{tpu_custom_call.1} parent=1 // pred_check_branch
      %78 = sbr.rel (0) target = $region45
    $region44: #{tpu_custom_call.1} parent=1 // pred_region
      %79 = dma.done [#allocation10], 1024
    $region45: #{tpu_custom_call.1} parent=1 // pred_fallthru
      _
    %p81 = scmp.eq.s32.totalorder 0, 0
    // Predicated region
    $region46: #{tpu_custom_call.1} parent=1 // pred_check
      %p82 = pneg %p81
    $region47: #{tpu_custom_call.1} parent=1 // pred_check_branch
      %84 = sbr.rel (%p82) target = $region49
    $region48: #{tpu_custom_call.1} parent=1 // pred_region
      %85 = vst [vmem:[#allocation2] sm:$0xff] 0.0
    $region49: #{tpu_custom_call.1} parent=1 // pred_fallthru
      _
    %v86 = vld [vmem:[#allocation2] sm:$0xff]
    %v87 = vld [vmem:[#allocation3] sm:$0xff]
    %v88 = vpack.c.bf16 %v87, %v87
    %v89 = vld [vmem:[#allocation6] sm:$0xf]
    %v90 = vld [vmem:[#allocation6 + $0x4] sm:$0xf]
    %v91 = vld [vmem:[#allocation6 + $0x8] sm:$0xf]
    %v92 = vld [vmem:[#allocation6 + $0xc] sm:$0xf]
    %v97 = vunpack.c.l.b16 %v89
    %v98 = vunpack.c.l.b16 %v90
    %v99 = vunpack.c.l.b16 %v91
    %v100 = vunpack.c.l.b16 %v92
    %v101 = vpack.c.b16 %v98, %v97
    %v102 = vpack.c.b16 %v100, %v99
    %vm105 = vcmask 261120
    %v107 = vsel %vm105, %v88, 0
    %109 = vmatprep.subr.bf16.mxu0 0
    %110 = vmatpush1.bf16.msra.mxu0 %v101
    %111 = vmatprep.subr.bf16.mxu0 0
    %112 = vmatpush1.bf16.msra.mxu0 %v102
    %113 = vmatprep.subr.bf16.mxu0 0
    %114 = vmatpush1.bf16.msra.mxu0 0
    %115 = vmatprep.subr.bf16.mxu0 0
    %116 = vmatpush1.bf16.msra.mxu0 0
    %117 = vmatprep.subr.bf16.mxu0 0
    %118 = vmatpush1.bf16.msra.mxu0 0
    %119 = vmatprep.subr.bf16.mxu0 0
    %120 = vmatpush1.bf16.msra.mxu0 0
    %121 = vmatprep.subr.bf16.mxu0 0
    %122 = vmatpush1.bf16.msra.mxu0 0
    %123 = vmatprep.subr.bf16.mxu0 0
    %124 = vmatpush1.bf16.msra.mxu0 0
    %125 = vmatprep.subr.bf16.mxu0 0
    %126 = vmatpush1.bf16.msra.mxu0 0
    %127 = vmatprep.subr.bf16.mxu0 0
    %128 = vmatpush1.bf16.msra.mxu0 0
    %129 = vmatprep.subr.bf16.mxu0 0
    %130 = vmatpush1.bf16.msra.mxu0 0
    %131 = vmatprep.subr.bf16.mxu0 0
    %132 = vmatpush1.bf16.msra.mxu0 0
    %133 = vmatprep.subr.bf16.mxu0 0
    %134 = vmatpush1.bf16.msra.mxu0 0
    %135 = vmatprep.subr.bf16.mxu0 0
    %136 = vmatpush1.bf16.msra.mxu0 0
    %137 = vmatprep.subr.bf16.mxu0 0
    %138 = vmatpush1.bf16.msra.mxu0 0
    %139 = vmatprep.subr.bf16.mxu0 0
    %140 = vmatpush1.bf16.msra.mxu0 0
    %141 = vmatprep.mubr.bf16.mxu0 0
    %142 = vmatmul.mubr.bf16.gmra.mrb[0].mxu0 %v107
    %v143 = vpop.f32.mrb[0].mxu0
    %v144 = vadd.f32 0.0, %v143
    %v145 = vpop.f32.mrb[0].mxu0
    %v146 = vpop.f32.mrb[0].mxu0
    %v147 = vpop.f32.mrb[0].mxu0
    %148 = vdwg.mxu0
    %v149 = vadd.f32 %v86, %v144
    %150 = vst [vmem:[#allocation2] sm:$0xff] %v149
    // Predicated region
    $region50: #{tpu_custom_call.1} parent=1 // pred_check
      %p151 = pneg %p81
    $region51: #{tpu_custom_call.1} parent=1 // pred_check_branch
      %153 = sbr.rel (%p151) target = $region53
    $region52: #{tpu_custom_call.1} parent=1 // pred_region
      %v154 = vld [vmem:[#allocation2] sm:$0xff]
      %v155 = vld [vmem:[%s2] sm:$0x1]
      %v157 = vlaneseq
      %v158 = vshrl.u32 %v157, 7
      %v159 = vsub.s32 0, %v158
      %v160 = vrot.slane %v155, %v159
      %v162 = vadd.f32 %v154, %v160
      %v163 = vmax.f32 %v162, 0.0
      %v164 = vpack.c.bf16 %v163, %v163
      %v165 = vld [vmem:[#allocation8] sm:$0xf]
      %v166 = vld [vmem:[#allocation8 + $0x4] sm:$0xf]
      %v167 = vld [vmem:[#allocation8 + $0x8] sm:$0xf]
      %v168 = vld [vmem:[#allocation8 + $0xc] sm:$0xf]
      %v169 = vld [vmem:[#allocation8 + $0x10] sm:$0xf]
      %v170 = vld [vmem:[#allocation8 + $0x14] sm:$0xf]
      %v171 = vld [vmem:[#allocation8 + $0x18] sm:$0xf]
      %v172 = vld [vmem:[#allocation8 + $0x1c] sm:$0xf]
      %v173 = vld [vmem:[#allocation8 + $0x20] sm:$0xf]
      %v174 = vld [vmem:[#allocation8 + $0x24] sm:$0xf]
      %v175 = vld [vmem:[#allocation8 + $0x28] sm:$0xf]
      %v176 = vld [vmem:[#allocation8 + $0x2c] sm:$0xf]
      %v177 = vld [vmem:[#allocation8 + $0x30] sm:$0xf]
      %v178 = vld [vmem:[#allocation8 + $0x34] sm:$0xf]
      %v179 = vld [vmem:[#allocation8 + $0x38] sm:$0xf]
      %v180 = vld [vmem:[#allocation8 + $0x3c] sm:$0xf]
      %v181 = vld [vmem:[%s4] sm:$0x1]
      %v183 = vlaneseq
      %v184 = vshrl.u32 %v183, 7
      %v185 = vsub.s32 0, %v184
      %v186 = vrot.slane %v181, %v185
      %v204 = vunpack.c.l.b16 %v165
      %v205 = vunpack.c.l.b16 %v166
      %v206 = vunpack.c.l.b16 %v167
      %v207 = vunpack.c.l.b16 %v168
      %v208 = vunpack.c.l.b16 %v169
      %v209 = vunpack.c.l.b16 %v170
      %v210 = vunpack.c.l.b16 %v171
      %v211 = vunpack.c.l.b16 %v172
      %v212 = vunpack.c.l.b16 %v173
      %v213 = vunpack.c.l.b16 %v174
      %v214 = vunpack.c.l.b16 %v175
      %v215 = vunpack.c.l.b16 %v176
      %v216 = vunpack.c.l.b16 %v177
      %v217 = vunpack.c.l.b16 %v178
      %v218 = vunpack.c.l.b16 %v179
      %v219 = vunpack.c.l.b16 %v180
      %v220 = vpack.c.b16 %v205, %v204
      %v221 = vpack.c.b16 %v207, %v206
      %v222 = vpack.c.b16 %v209, %v208
      %v223 = vpack.c.b16 %v211, %v210
      %v224 = vpack.c.b16 %v213, %v212
      %v225 = vpack.c.b16 %v215, %v214
      %v226 = vpack.c.b16 %v217, %v216
      %v227 = vpack.c.b16 %v219, %v218
      %236 = vmatprep.subr.bf16.mxu0 0
      %237 = vmatpush1.bf16.msra.mxu0 %v220
      %238 = vmatprep.subr.bf16.mxu0 0
      %239 = vmatpush1.bf16.msra.mxu0 %v221
      %240 = vmatprep.subr.bf16.mxu0 0
      %241 = vmatpush1.bf16.msra.mxu0 %v222
      %242 = vmatprep.subr.bf16.mxu0 0
      %243 = vmatpush1.bf16.msra.mxu0 %v223
      %244 = vmatprep.subr.bf16.mxu0 0
      %245 = vmatpush1.bf16.msra.mxu0 %v224
      %246 = vmatprep.subr.bf16.mxu0 0
      %247 = vmatpush1.bf16.msra.mxu0 %v225
      %248 = vmatprep.subr.bf16.mxu0 0
      %249 = vmatpush1.bf16.msra.mxu0 %v226
      %250 = vmatprep.subr.bf16.mxu0 0
      %251 = vmatpush1.bf16.msra.mxu0 %v227
      %252 = vmatprep.subr.bf16.mxu0 0
      %253 = vmatpush1.bf16.msra.mxu0 0
      %254 = vmatprep.subr.bf16.mxu0 0
      %255 = vmatpush1.bf16.msra.mxu0 0
      %256 = vmatprep.subr.bf16.mxu0 0
      %257 = vmatpush1.bf16.msra.mxu0 0
      %258 = vmatprep.subr.bf16.mxu0 0
      %259 = vmatpush1.bf16.msra.mxu0 0
      %260 = vmatprep.subr.bf16.mxu0 0
      %261 = vmatpush1.bf16.msra.mxu0 0
      %262 = vmatprep.subr.bf16.mxu0 0
      %263 = vmatpush1.bf16.msra.mxu0 0
      %264 = vmatprep.subr.bf16.mxu0 0
      %265 = vmatpush1.bf16.msra.mxu0 0
      %266 = vmatprep.subr.bf16.mxu0 0
      %267 = vmatpush1.bf16.msra.mxu0 0
      %268 = vmatprep.mubr.bf16.mxu0 0
      %269 = vmatmul.mubr.bf16.gmra.mrb[0].mxu0 %v164
      %v270 = vpop.f32.mrb[0].mxu0
      %v271 = vadd.f32 %v186, %v270
      %v272 = vpop.f32.mrb[0].mxu0
      %v273 = vpop.f32.mrb[0].mxu0
      %v274 = vpop.f32.mrb[0].mxu0
      %275 = vdwg.mxu0
      %v276 = vmax.f32 %v271, 0.0
      %v277 = vpack.c.bf16 %v276, %v276
      %v278 = vld [vmem:[#allocation9] sm:$0xf]
      %v279 = vld [vmem:[#allocation9 + $0x4] sm:$0xf]
      %v280 = vld [vmem:[#allocation9 + $0x8] sm:$0xf]
      %v281 = vld [vmem:[#allocation9 + $0xc] sm:$0xf]
      %v282 = vld [vmem:[#allocation9 + $0x10] sm:$0xf]
      %v283 = vld [vmem:[#allocation9 + $0x14] sm:$0xf]
      %v284 = vld [vmem:[#allocation9 + $0x18] sm:$0xf]
      %v285 = vld [vmem:[#allocation9 + $0x1c] sm:$0xf]
      %v286 = vld [vmem:[#allocation9 + $0x20] sm:$0xf]
      %v287 = vld [vmem:[#allocation9 + $0x24] sm:$0xf]
      %v288 = vld [vmem:[#allocation9 + $0x28] sm:$0xf]
      %v289 = vld [vmem:[#allocation9 + $0x2c] sm:$0xf]
      %v290 = vld [vmem:[#allocation9 + $0x30] sm:$0xf]
      %v291 = vld [vmem:[#allocation9 + $0x34] sm:$0xf]
      %v292 = vld [vmem:[#allocation9 + $0x38] sm:$0xf]
      %v293 = vld [vmem:[#allocation9 + $0x3c] sm:$0xf]
      %v294 = vld [vmem:[%s6] sm:$0x1]
      %v296 = vlaneseq
      %v297 = vshrl.u32 %v296, 7
      %v298 = vsub.s32 0, %v297
      %v299 = vrot.slane %v294, %v298
      %v317 = vunpack.c.l.b16 %v278
      %v318 = vunpack.c.l.b16 %v279
      %v319 = vunpack.c.l.b16 %v280
      %v320 = vunpack.c.l.b16 %v281
      %v321 = vunpack.c.l.b16 %v282
      %v322 = vunpack.c.l.b16 %v283
      %v323 = vunpack.c.l.b16 %v284
      %v324 = vunpack.c.l.b16 %v285
      %v325 = vunpack.c.l.b16 %v286
      %v326 = vunpack.c.l.b16 %v287
      %v327 = vunpack.c.l.b16 %v288
      %v328 = vunpack.c.l.b16 %v289
      %v329 = vunpack.c.l.b16 %v290
      %v330 = vunpack.c.l.b16 %v291
      %v331 = vunpack.c.l.b16 %v292
      %v332 = vunpack.c.l.b16 %v293
      %v333 = vpack.c.b16 %v318, %v317
      %v334 = vpack.c.b16 %v320, %v319
      %v335 = vpack.c.b16 %v322, %v321
      %v336 = vpack.c.b16 %v324, %v323
      %v337 = vpack.c.b16 %v326, %v325
      %v338 = vpack.c.b16 %v328, %v327
      %v339 = vpack.c.b16 %v330, %v329
      %v340 = vpack.c.b16 %v332, %v331
      %349 = vmatprep.subr.bf16.mxu0 0
      %350 = vmatpush1.bf16.msra.mxu0 %v333
      %351 = vmatprep.subr.bf16.mxu0 0
      %352 = vmatpush1.bf16.msra.mxu0 %v334
      %353 = vmatprep.subr.bf16.mxu0 0
      %354 = vmatpush1.bf16.msra.mxu0 %v335
      %355 = vmatprep.subr.bf16.mxu0 0
      %356 = vmatpush1.bf16.msra.mxu0 %v336
      %357 = vmatprep.subr.bf16.mxu0 0
      %358 = vmatpush1.bf16.msra.mxu0 %v337
      %359 = vmatprep.subr.bf16.mxu0 0
      %360 = vmatpush1.bf16.msra.mxu0 %v338
      %361 = vmatprep.subr.bf16.mxu0 0
      %362 = vmatpush1.bf16.msra.mxu0 %v339
      %363 = vmatprep.subr.bf16.mxu0 0
      %364 = vmatpush1.bf16.msra.mxu0 %v340
      %365 = vmatprep.subr.bf16.mxu0 0
      %366 = vmatpush1.bf16.msra.mxu0 0
      %367 = vmatprep.subr.bf16.mxu0 0
      %368 = vmatpush1.bf16.msra.mxu0 0
      %369 = vmatprep.subr.bf16.mxu0 0
      %370 = vmatpush1.bf16.msra.mxu0 0
      %371 = vmatprep.subr.bf16.mxu0 0
      %372 = vmatpush1.bf16.msra.mxu0 0
      %373 = vmatprep.subr.bf16.mxu0 0
      %374 = vmatpush1.bf16.msra.mxu0 0
      %375 = vmatprep.subr.bf16.mxu0 0
      %376 = vmatpush1.bf16.msra.mxu0 0
      %377 = vmatprep.subr.bf16.mxu0 0
      %378 = vmatpush1.bf16.msra.mxu0 0
      %379 = vmatprep.subr.bf16.mxu0 0
      %380 = vmatpush1.bf16.msra.mxu0 0
      %381 = vmatprep.mubr.bf16.mxu0 0
      %382 = vmatmul.mubr.bf16.gmra.mrb[0].mxu0 %v277
      %v383 = vpop.f32.mrb[0].mxu0
      %v384 = vadd.f32 %v299, %v383
      %v385 = vpop.f32.mrb[0].mxu0
      %v386 = vpop.f32.mrb[0].mxu0
      %v387 = vpop.f32.mrb[0].mxu0
      %388 = vdwg.mxu0
      %389 = vst [vmem:[#allocation11] sm:$0xff] %v384
    $region53: #{tpu_custom_call.1} parent=1 // pred_fallthru
      _
    // Predicated region
    $region54: #{tpu_custom_call.1} parent=1 // pred_check
      _
    $region55: #{tpu_custom_call.1} parent=1 // pred_check_branch
      %391 = sbr.rel (0) target = $region57
    $region56: #{tpu_custom_call.1} parent=1 // pred_region
      %s393 = ssub.s32 128, 128
      %394 = vsyncadd [#allocation5], %s393
      %s396 = sshll.u32 [#allocation11], 4
      %s397 = int_to_ptr.vmem [resolvable:$true] %s396
      %399 = dma.vmem_to_hbm [thread:$0]  %s397, 128, %s7, [#allocation5]
    $region57: #{tpu_custom_call.1} parent=1 // pred_fallthru
      _
    // Predicated region
    $region58: #{tpu_custom_call.1} parent=1 // pred_check
      _
    $region59: #{tpu_custom_call.1} parent=1 // pred_check_branch
      %401 = sbr.rel (0) target = $region61
    $region60: #{tpu_custom_call.1} parent=1 // pred_region
      %402 = dma.done [#allocation5], 128
    $region61: #{tpu_custom_call.1} parent=1 // pred_fallthru
      _
    %403 = vsyncpa [#allocation4], 1
    %404 = vsyncpa [#allocation7], 1
    %405 = vsyncpa [#allocation10], 1
    %406 = vsyncpa [#allocation5], 1

// kernel: tpu_custom_call.1
$region0: #{tpu_custom_call.1}
  #allocation0 [shape = 'u32[]', space=smem, size = 0x4, offset = 0x4, fixed_abs, tag = 'smem constant byte address 0x4 - core index']
  #allocation1 [shape = 'u32[144,128]{1,0:T(1,128)}', space=vmem, size = 0x12000, scoped, tag = 'internal scratch']
  #allocation2 [shape = 'f32[8,128]{1,0:T(8,128)}', space=vmem, size = 0x1000, scoped, tag = 'scratch operand']
  %s0 = inlined_call_operand.hbm [shape: f32[8,32], index: 0, kind: input, shape index: {}]
  %s1 = inlined_call_operand.hbm [shape: bf16[32,128], index: 1, kind: input, shape index: {}]
  %s2 = inlined_call_operand.vmem [shape: f32[1,128], index: 2, kind: input, shape index: {}]
  %s3 = inlined_call_operand.hbm [shape: bf16[128,128], index: 3, kind: input, shape index: {}]
  %s4 = inlined_call_operand.vmem [shape: f32[1,128], index: 4, kind: input, shape index: {}]
  %s5 = inlined_call_operand.hbm [shape: bf16[128,128], index: 5, kind: input, shape index: {}]
  %s6 = inlined_call_operand.vmem [shape: f32[1,128], index: 6, kind: input, shape index: {}]
  %s7 = inlined_call_operand.hbm [shape: f32[8,128], index: 7, kind: output, shape index: {}]
  %s8 = sld [smem:[#allocation0]]
  $region62: #{tpu_custom_call.1} parent=0
    _
  %s10 = ssub.s32 1, %s8
  %s11 = scalar_select 0, %s10, %s8
  $region1: #{tpu_custom_call.1} parent=0
    #allocation3 [shape = 'u8[4096]{0}', space=vmem, size = 0x1000, scoped, tag = 'input window, operand 0, single buffered']
    #allocation4 [shape = 's32[1]{0}', space=sflag, size = 0x4, scoped, tag = 'scoped memory for tpu_custom_call.1']
    #allocation5 [shape = 's32[1]{0}', space=sflag, size = 0x4, scoped, tag = 'scoped memory for tpu_custom_call.1']
    #allocation6 [shape = 'u8[8192]{0}', space=vmem, size = 0x2000, scoped, tag = 'input window, operand 1, single buffered']
    #allocation7 [shape = 's32[1]{0}', space=sflag, size = 0x4, scoped, tag = 'scoped memory for tpu_custom_call.1']
    #allocation8 [shape = 'u8[32768]{0}', space=vmem, size = 0x8000, scoped, tag = 'input window, operand 3, single buffered']
    #allocation9 [shape = 'u8[32768]{0}', space=vmem, size = 0x8000, scoped, tag = 'input window, operand 5, single buffered']
    #allocation10 [shape = 's32[1]{0}', space=sflag, size = 0x4, scoped, tag = 'scoped memory for tpu_custom_call.1']
    #allocation11 [shape = 'u8[4096]{0}', space=vmem, size = 0x1000, scoped, tag = 'output window, operand 0, single buffered']
    %12 = vsyncpa [#allocation4], 0
    %13 = vsyncpa [#allocation7], 0
    %14 = vsyncpa [#allocation10], 0
    %15 = vsyncpa [#allocation5], 0
    // Predicated region
    $region2: #{tpu_custom_call.1} parent=1 // pred_check
      _
    $region3: #{tpu_custom_call.1} parent=1 // pred_check_branch
      %17 = sbr.rel (0) target = $region5
    $region4: #{tpu_custom_call.1} parent=1 // pred_region
      %s19 = ssub.s32 128, 128
      %20 = vsyncadd [#allocation4], %s19
      %s22 = sshll.u32 [#allocation3], 4
      %s23 = int_to_ptr.vmem [resolvable:$true] %s22
      %25 = dma.hbm_to_vmem [thread:$0]  %s0, 128, %s23, [#allocation4]
    $region5: #{tpu_custom_call.1} parent=1 // pred_fallthru
      _
    // Predicated region
    $region6: #{tpu_custom_call.1} parent=1 // pred_check
      _
    $region7: #{tpu_custom_call.1} parent=1 // pred_check_branch
      %27 = sbr.rel (0) target = $region9
    $region8: #{tpu_custom_call.1} parent=1 // pred_region
      %s29 = ssub.s32 256, 256
      %30 = vsyncadd [#allocation7], %s29
      %s31 = sshll.u32 [#allocation6], 4
      %s32 = int_to_ptr.vmem [resolvable:$true] %s31
      %37 = dma.hbm_to_vmem [thread:$0]  %s1, 256, %s32, [#allocation7], 64, 64, 4
    $region9: #{tpu_custom_call.1} parent=1 // pred_fallthru
      _
    // Predicated region
    $region10: #{tpu_custom_call.1} parent=1 // pred_check
      _
    $region11: #{tpu_custom_call.1} parent=1 // pred_check_branch
      %39 = sbr.rel (0) target = $region13
    $region12: #{tpu_custom_call.1} parent=1 // pred_region
      _
    $region13: #{tpu_custom_call.1} parent=1 // pred_fallthru
      _
    // Predicated region
    $region14: #{tpu_custom_call.1} parent=1 // pred_check
      _
    $region15: #{tpu_custom_call.1} parent=1 // pred_check_branch
      %41 = sbr.rel (0) target = $region17
    $region16: #{tpu_custom_call.1} parent=1 // pred_region
      %s43 = ssub.s32 1024, 1024
      %44 = vsyncadd [#allocation7], %s43
      %s45 = sshll.u32 [#allocation8], 4
      %s46 = int_to_ptr.vmem [resolvable:$true] %s45
      %51 = dma.hbm_to_vmem [thread:$0]  %s3, 1024, %s46, [#allocation7], 64, 64, 4
    $region17: #{tpu_custom_call.1} parent=1 // pred_fallthru
      _
    // Predicated region
    $region18: #{tpu_custom_call.1} parent=1 // pred_check
      _
    $region19: #{tpu_custom_call.1} parent=1 // pred_check_branch
      %53 = sbr.rel (0) target = $region21
    $region20: #{tpu_custom_call.1} parent=1 // pred_region
      _
    $region21: #{tpu_custom_call.1} parent=1 // pred_fallthru
      _
    // Predicated region
    $region22: #{tpu_custom_call.1} parent=1 // pred_check
      _
    $region23: #{tpu_custom_call.1} parent=1 // pred_check_branch
      %55 = sbr.rel (0) target = $region25
    $region24: #{tpu_custom_call.1} parent=1 // pred_region
      %s57 = ssub.s32 1024, 1024
      %58 = vsyncadd [#allocation10], %s57
      %s59 = sshll.u32 [#allocation9], 4
      %s60 = int_to_ptr.vmem [resolvable:$true] %s59
      %65 = dma.hbm_to_vmem [thread:$0]  %s5, 1024, %s60, [#allocation10], 64, 64, 4
    $region25: #{tpu_custom_call.1} parent=1 // pred_fallthru
      _
    // Predicated region
    $region26: #{tpu_custom_call.1} parent=1 // pred_check
      _
    $region27: #{tpu_custom_call.1} parent=1 // pred_check_branch
      %67 = sbr.rel (0) target = $region29
    $region28: #{tpu_custom_call.1} parent=1 // pred_region
      _
    $region29: #{tpu_custom_call.1} parent=1 // pred_fallthru
      _
    // Predicated region
    $region30: #{tpu_custom_call.1} parent=1 // pred_check
      _
    $region31: #{tpu_custom_call.1} parent=1 // pred_check_branch
      %69 = sbr.rel (0) target = $region33
    $region32: #{tpu_custom_call.1} parent=1 // pred_region
      %70 = dma.done [#allocation4], 128
    $region33: #{tpu_custom_call.1} parent=1 // pred_fallthru
      _
    // Predicated region
    $region34: #{tpu_custom_call.1} parent=1 // pred_check
      _
    $region35: #{tpu_custom_call.1} parent=1 // pred_check_branch
      %72 = sbr.rel (0) target = $region37
    $region36: #{tpu_custom_call.1} parent=1 // pred_region
      %73 = dma.done [#allocation7], 256
    $region37: #{tpu_custom_call.1} parent=1 // pred_fallthru
      _
    // Predicated region
    $region38: #{tpu_custom_call.1} parent=1 // pred_check
      _
    $region39: #{tpu_custom_call.1} parent=1 // pred_check_branch
      %75 = sbr.rel (0) target = $region41
    $region40: #{tpu_custom_call.1} parent=1 // pred_region
      %76 = dma.done [#allocation7], 1024
    $region41: #{tpu_custom_call.1} parent=1 // pred_fallthru
      _
    // Predicated region
    $region42: #{tpu_custom_call.1} parent=1 // pred_check
      _
    $region43: #{tpu_custom_call.1} parent=1 // pred_check_branch
      %78 = sbr.rel (0) target = $region45
    $region44: #{tpu_custom_call.1} parent=1 // pred_region
      %79 = dma.done [#allocation10], 1024
    $region45: #{tpu_custom_call.1} parent=1 // pred_fallthru
      _
    %p81 = scmp.eq.s32.totalorder 0, 0
    // Predicated region
    $region46: #{tpu_custom_call.1} parent=1 // pred_check
      %p82 = pneg %p81
    $region47: #{tpu_custom_call.1} parent=1 // pred_check_branch
      %84 = sbr.rel (%p82) target = $region49
    $region48: #{tpu_custom_call.1} parent=1 // pred_region
      %85 = vst [vmem:[#allocation2] sm:$0xff] 0.0
    $region49: #{tpu_custom_call.1} parent=1 // pred_fallthru
      _
    %v86 = vld [vmem:[#allocation2] sm:$0xff]
    %v87 = vld [vmem:[#allocation3] sm:$0xff]
    %v88 = vpack.c.bf16 %v87, %v87
    %v89 = vld [vmem:[#allocation6] sm:$0xf]
    %v90 = vld [vmem:[#allocation6 + $0x4] sm:$0xf]
    %v91 = vld [vmem:[#allocation6 + $0x8] sm:$0xf]
    %v92 = vld [vmem:[#allocation6 + $0xc] sm:$0xf]
    %v97 = vunpack.c.l.b16 %v89
    %v98 = vunpack.c.l.b16 %v90
    %v99 = vunpack.c.l.b16 %v91
    %v100 = vunpack.c.l.b16 %v92
    %v101 = vpack.c.b16 %v98, %v97
    %v102 = vpack.c.b16 %v100, %v99
    %vm105 = vcmask 261120
    %v107 = vsel %vm105, %v88, 0
    %109 = vmatprep.subr.bf16.mxu0 0
    %110 = vmatpush1.bf16.msra.mxu0 %v101
    %111 = vmatprep.subr.bf16.mxu0 0
    %112 = vmatpush1.bf16.msra.mxu0 %v102
    %113 = vmatprep.subr.bf16.mxu0 0
    %114 = vmatpush1.bf16.msra.mxu0 0
    %115 = vmatprep.subr.bf16.mxu0 0
    %116 = vmatpush1.bf16.msra.mxu0 0
    %117 = vmatprep.subr.bf16.mxu0 0
    %118 = vmatpush1.bf16.msra.mxu0 0
    %119 = vmatprep.subr.bf16.mxu0 0
    %120 = vmatpush1.bf16.msra.mxu0 0
    %121 = vmatprep.subr.bf16.mxu0 0
    %122 = vmatpush1.bf16.msra.mxu0 0
    %123 = vmatprep.subr.bf16.mxu0 0
    %124 = vmatpush1.bf16.msra.mxu0 0
    %125 = vmatprep.subr.bf16.mxu0 0
    %126 = vmatpush1.bf16.msra.mxu0 0
    %127 = vmatprep.subr.bf16.mxu0 0
    %128 = vmatpush1.bf16.msra.mxu0 0
    %129 = vmatprep.subr.bf16.mxu0 0
    %130 = vmatpush1.bf16.msra.mxu0 0
    %131 = vmatprep.subr.bf16.mxu0 0
    %132 = vmatpush1.bf16.msra.mxu0 0
    %133 = vmatprep.subr.bf16.mxu0 0
    %134 = vmatpush1.bf16.msra.mxu0 0
    %135 = vmatprep.subr.bf16.mxu0 0
    %136 = vmatpush1.bf16.msra.mxu0 0
    %137 = vmatprep.subr.bf16.mxu0 0
    %138 = vmatpush1.bf16.msra.mxu0 0
    %139 = vmatprep.subr.bf16.mxu0 0
    %140 = vmatpush1.bf16.msra.mxu0 0
    %141 = vmatprep.mubr.bf16.mxu0 0
    %142 = vmatmul.mubr.bf16.gmra.mrb[0].mxu0 %v107
    %v143 = vpop.f32.mrb[0].mxu0
    %v144 = vadd.f32 0.0, %v143
    %v145 = vpop.f32.mrb[0].mxu0
    %v146 = vpop.f32.mrb[0].mxu0
    %v147 = vpop.f32.mrb[0].mxu0
    %148 = vdwg.mxu0
    %v149 = vadd.f32 %v86, %v144
    %150 = vst [vmem:[#allocation2] sm:$0xff] %v149
    // Predicated region
    $region50: #{tpu_custom_call.1} parent=1 // pred_check
      %p151 = pneg %p81
    $region51: #{tpu_custom_call.1} parent=1 // pred_check_branch
      %153 = sbr.rel (%p151) target = $region53
    $region52: #{tpu_custom_call.1} parent=1 // pred_region
      %v154 = vld [vmem:[#allocation2] sm:$0xff]
      %v155 = vld [vmem:[%s2] sm:$0x1]
      %v157 = vlaneseq
      %v158 = vshrl.u32 %v157, 7
      %v159 = vsub.s32 0, %v158
      %v160 = vrot.slane %v155, %v159
      %v162 = vadd.f32 %v154, %v160
      %v163 = vmax.f32 %v162, 0.0
      %v164 = vpack.c.bf16 %v163, %v163
      %v165 = vld [vmem:[#allocation8] sm:$0xf]
      %v166 = vld [vmem:[#allocation8 + $0x4] sm:$0xf]
      %v167 = vld [vmem:[#allocation8 + $0x8] sm:$0xf]
      %v168 = vld [vmem:[#allocation8 + $0xc] sm:$0xf]
      %v169 = vld [vmem:[#allocation8 + $0x10] sm:$0xf]
      %v170 = vld [vmem:[#allocation8 + $0x14] sm:$0xf]
      %v171 = vld [vmem:[#allocation8 + $0x18] sm:$0xf]
      %v172 = vld [vmem:[#allocation8 + $0x1c] sm:$0xf]
      %v173 = vld [vmem:[#allocation8 + $0x20] sm:$0xf]
      %v174 = vld [vmem:[#allocation8 + $0x24] sm:$0xf]
      %v175 = vld [vmem:[#allocation8 + $0x28] sm:$0xf]
      %v176 = vld [vmem:[#allocation8 + $0x2c] sm:$0xf]
      %v177 = vld [vmem:[#allocation8 + $0x30] sm:$0xf]
      %v178 = vld [vmem:[#allocation8 + $0x34] sm:$0xf]
      %v179 = vld [vmem:[#allocation8 + $0x38] sm:$0xf]
      %v180 = vld [vmem:[#allocation8 + $0x3c] sm:$0xf]
      %v181 = vld [vmem:[%s4] sm:$0x1]
      %v183 = vlaneseq
      %v184 = vshrl.u32 %v183, 7
      %v185 = vsub.s32 0, %v184
      %v186 = vrot.slane %v181, %v185
      %v204 = vunpack.c.l.b16 %v165
      %v205 = vunpack.c.l.b16 %v166
      %v206 = vunpack.c.l.b16 %v167
      %v207 = vunpack.c.l.b16 %v168
      %v208 = vunpack.c.l.b16 %v169
      %v209 = vunpack.c.l.b16 %v170
      %v210 = vunpack.c.l.b16 %v171
      %v211 = vunpack.c.l.b16 %v172
      %v212 = vunpack.c.l.b16 %v173
      %v213 = vunpack.c.l.b16 %v174
      %v214 = vunpack.c.l.b16 %v175
      %v215 = vunpack.c.l.b16 %v176
      %v216 = vunpack.c.l.b16 %v177
      %v217 = vunpack.c.l.b16 %v178
      %v218 = vunpack.c.l.b16 %v179
      %v219 = vunpack.c.l.b16 %v180
      %v220 = vpack.c.b16 %v205, %v204
      %v221 = vpack.c.b16 %v207, %v206
      %v222 = vpack.c.b16 %v209, %v208
      %v223 = vpack.c.b16 %v211, %v210
      %v224 = vpack.c.b16 %v213, %v212
      %v225 = vpack.c.b16 %v215, %v214
      %v226 = vpack.c.b16 %v217, %v216
      %v227 = vpack.c.b16 %v219, %v218
      %236 = vmatprep.subr.bf16.mxu0 0
      %237 = vmatpush1.bf16.msra.mxu0 %v220
      %238 = vmatprep.subr.bf16.mxu0 0
      %239 = vmatpush1.bf16.msra.mxu0 %v221
      %240 = vmatprep.subr.bf16.mxu0 0
      %241 = vmatpush1.bf16.msra.mxu0 %v222
      %242 = vmatprep.subr.bf16.mxu0 0
      %243 = vmatpush1.bf16.msra.mxu0 %v223
      %244 = vmatprep.subr.bf16.mxu0 0
      %245 = vmatpush1.bf16.msra.mxu0 %v224
      %246 = vmatprep.subr.bf16.mxu0 0
      %247 = vmatpush1.bf16.msra.mxu0 %v225
      %248 = vmatprep.subr.bf16.mxu0 0
      %249 = vmatpush1.bf16.msra.mxu0 %v226
      %250 = vmatprep.subr.bf16.mxu0 0
      %251 = vmatpush1.bf16.msra.mxu0 %v227
      %252 = vmatprep.subr.bf16.mxu0 0
      %253 = vmatpush1.bf16.msra.mxu0 0
      %254 = vmatprep.subr.bf16.mxu0 0
      %255 = vmatpush1.bf16.msra.mxu0 0
      %256 = vmatprep.subr.bf16.mxu0 0
      %257 = vmatpush1.bf16.msra.mxu0 0
      %258 = vmatprep.subr.bf16.mxu0 0
      %259 = vmatpush1.bf16.msra.mxu0 0
      %260 = vmatprep.subr.bf16.mxu0 0
      %261 = vmatpush1.bf16.msra.mxu0 0
      %262 = vmatprep.subr.bf16.mxu0 0
      %263 = vmatpush1.bf16.msra.mxu0 0
      %264 = vmatprep.subr.bf16.mxu0 0
      %265 = vmatpush1.bf16.msra.mxu0 0
      %266 = vmatprep.subr.bf16.mxu0 0
      %267 = vmatpush1.bf16.msra.mxu0 0
      %268 = vmatprep.mubr.bf16.mxu0 0
      %269 = vmatmul.mubr.bf16.gmra.mrb[0].mxu0 %v164
      %v270 = vpop.f32.mrb[0].mxu0
      %v271 = vadd.f32 %v186, %v270
      %v272 = vpop.f32.mrb[0].mxu0
      %v273 = vpop.f32.mrb[0].mxu0
      %v274 = vpop.f32.mrb[0].mxu0
      %275 = vdwg.mxu0
      %v276 = vmax.f32 %v271, 0.0
      %v277 = vpack.c.bf16 %v276, %v276
      %v278 = vld [vmem:[#allocation9] sm:$0xf]
      %v279 = vld [vmem:[#allocation9 + $0x4] sm:$0xf]
      %v280 = vld [vmem:[#allocation9 + $0x8] sm:$0xf]
      %v281 = vld [vmem:[#allocation9 + $0xc] sm:$0xf]
      %v282 = vld [vmem:[#allocation9 + $0x10] sm:$0xf]
      %v283 = vld [vmem:[#allocation9 + $0x14] sm:$0xf]
      %v284 = vld [vmem:[#allocation9 + $0x18] sm:$0xf]
      %v285 = vld [vmem:[#allocation9 + $0x1c] sm:$0xf]
      %v286 = vld [vmem:[#allocation9 + $0x20] sm:$0xf]
      %v287 = vld [vmem:[#allocation9 + $0x24] sm:$0xf]
      %v288 = vld [vmem:[#allocation9 + $0x28] sm:$0xf]
      %v289 = vld [vmem:[#allocation9 + $0x2c] sm:$0xf]
      %v290 = vld [vmem:[#allocation9 + $0x30] sm:$0xf]
      %v291 = vld [vmem:[#allocation9 + $0x34] sm:$0xf]
      %v292 = vld [vmem:[#allocation9 + $0x38] sm:$0xf]
      %v293 = vld [vmem:[#allocation9 + $0x3c] sm:$0xf]
      %v294 = vld [vmem:[%s6] sm:$0x1]
      %v296 = vlaneseq
      %v297 = vshrl.u32 %v296, 7
      %v298 = vsub.s32 0, %v297
      %v299 = vrot.slane %v294, %v298
      %v317 = vunpack.c.l.b16 %v278
      %v318 = vunpack.c.l.b16 %v279
      %v319 = vunpack.c.l.b16 %v280
      %v320 = vunpack.c.l.b16 %v281
      %v321 = vunpack.c.l.b16 %v282
      %v322 = vunpack.c.l.b16 %v283
      %v323 = vunpack.c.l.b16 %v284
      %v324 = vunpack.c.l.b16 %v285
      %v325 = vunpack.c.l.b16 %v286
      %v326 = vunpack.c.l.b16 %v287
      %v327 = vunpack.c.l.b16 %v288
      %v328 = vunpack.c.l.b16 %v289
      %v329 = vunpack.c.l.b16 %v290
      %v330 = vunpack.c.l.b16 %v291
      %v331 = vunpack.c.l.b16 %v292
      %v332 = vunpack.c.l.b16 %v293
      %v333 = vpack.c.b16 %v318, %v317
      %v334 = vpack.c.b16 %v320, %v319
      %v335 = vpack.c.b16 %v322, %v321
      %v336 = vpack.c.b16 %v324, %v323
      %v337 = vpack.c.b16 %v326, %v325
      %v338 = vpack.c.b16 %v328, %v327
      %v339 = vpack.c.b16 %v330, %v329
      %v340 = vpack.c.b16 %v332, %v331
      %349 = vmatprep.subr.bf16.mxu0 0
      %350 = vmatpush1.bf16.msra.mxu0 %v333
      %351 = vmatprep.subr.bf16.mxu0 0
      %352 = vmatpush1.bf16.msra.mxu0 %v334
      %353 = vmatprep.subr.bf16.mxu0 0
      %354 = vmatpush1.bf16.msra.mxu0 %v335
      %355 = vmatprep.subr.bf16.mxu0 0
      %356 = vmatpush1.bf16.msra.mxu0 %v336
      %357 = vmatprep.subr.bf16.mxu0 0
      %358 = vmatpush1.bf16.msra.mxu0 %v337
      %359 = vmatprep.subr.bf16.mxu0 0
      %360 = vmatpush1.bf16.msra.mxu0 %v338
      %361 = vmatprep.subr.bf16.mxu0 0
      %362 = vmatpush1.bf16.msra.mxu0 %v339
      %363 = vmatprep.subr.bf16.mxu0 0
      %364 = vmatpush1.bf16.msra.mxu0 %v340
      %365 = vmatprep.subr.bf16.mxu0 0
      %366 = vmatpush1.bf16.msra.mxu0 0
      %367 = vmatprep.subr.bf16.mxu0 0
      %368 = vmatpush1.bf16.msra.mxu0 0
      %369 = vmatprep.subr.bf16.mxu0 0
      %370 = vmatpush1.bf16.msra.mxu0 0
      %371 = vmatprep.subr.bf16.mxu0 0
      %372 = vmatpush1.bf16.msra.mxu0 0
      %373 = vmatprep.subr.bf16.mxu0 0
      %374 = vmatpush1.bf16.msra.mxu0 0
      %375 = vmatprep.subr.bf16.mxu0 0
      %376 = vmatpush1.bf16.msra.mxu0 0
      %377 = vmatprep.subr.bf16.mxu0 0
      %378 = vmatpush1.bf16.msra.mxu0 0
      %379 = vmatprep.subr.bf16.mxu0 0
      %380 = vmatpush1.bf16.msra.mxu0 0
      %381 = vmatprep.mubr.bf16.mxu0 0
      %382 = vmatmul.mubr.bf16.gmra.mrb[0].mxu0 %v277
      %v383 = vpop.f32.mrb[0].mxu0
      %v384 = vadd.f32 %v299, %v383
      %v385 = vpop.f32.mrb[0].mxu0
      %v386 = vpop.f32.mrb[0].mxu0
      %v387 = vpop.f32.mrb[0].mxu0
      %388 = vdwg.mxu0
      %389 = vst [vmem:[#allocation11] sm:$0xff] %v384
    $region53: #{tpu_custom_call.1} parent=1 // pred_fallthru
      _
    // Predicated region
    $region54: #{tpu_custom_call.1} parent=1 // pred_check
      _
    $region55: #{tpu_custom_call.1} parent=1 // pred_check_branch
      %391 = sbr.rel (0) target = $region57
    $region56: #{tpu_custom_call.1} parent=1 // pred_region
      %s393 = ssub.s32 128, 128
      %394 = vsyncadd [#allocation5], %s393
      %s396 = sshll.u32 [#allocation11], 4
      %s397 = int_to_ptr.vmem [resolvable:$true] %s396
      %399 = dma.vmem_to_hbm [thread:$0]  %s397, 128, %s7, [#allocation5]
    $region57: #{tpu_custom_call.1} parent=1 // pred_fallthru
      _
    // Predicated region
    $region58: #{tpu_custom_call.1} parent=1 // pred_check
      _
    $region59: #{tpu_custom_call.1} parent=1 // pred_check_branch
      %401 = sbr.rel (0) target = $region61
    $region60: #{tpu_custom_call.1} parent=1 // pred_region
      %402 = dma.done [#allocation5], 128
    $region61: #{tpu_custom_call.1} parent=1 // pred_fallthru
      _
    %403 = vsyncpa [#allocation4], 1
    %404 = vsyncpa [#allocation7], 1
    %405 = vsyncpa [#allocation10], 1
    %406 = vsyncpa [#allocation5], 1

</llo_original>
